<compile_context>
chip_gen: v5e
topology: v5e:2x2
jax: 0.10.0
libtpu: 0.0.40
codegen_flags: <defaults>
</compile_context>

<pallas_src>
import functools

import jax
import jax.numpy as jnp
from jax.experimental import pallas as pl
from jax.experimental.pallas import tpu as pltpu


def _round_up(x, m):
    return (x + m - 1) // m * m


def _lm_head_kernel(x_ref, w_ref, b_ref, o_ref, acc_ref):
    # x_ref: (tm, tk)  w_ref: (tk, tn)  b_ref: (1, tn)
    # o_ref: (tm, tn)  acc_ref: (tm, tn) f32 scratch
    k = pl.program_id(2)

    @pl.when(k == 0)
    def _():
        acc_ref[...] = jnp.zeros_like(acc_ref)

    acc_ref[...] += jnp.dot(
        x_ref[...], w_ref[...], preferred_element_type=jnp.float32
    )

    @pl.when(k == pl.num_programs(2) - 1)
    def _():
        o_ref[...] = (acc_ref[...] + b_ref[...].astype(jnp.float32)).astype(
            o_ref.dtype
        )


@functools.partial(jax.jit, static_argnames=("tm", "tn", "tk", "compute_dtype"))
def lm_head_pallas(x, w, b, *, tm=256, tn=512, tk=2048,
                   compute_dtype=jnp.bfloat16):
    """x: (batch, seq, E) ; w: (E, V) ; b: (V,) -> (batch, seq, V)."""
    batch, seq, emb = x.shape
    vocab = w.shape[1]
    out_dtype = x.dtype
    m = batch * seq

    cdt = compute_dtype if compute_dtype is not None else x.dtype

    # Effective tile sizes, clamped to the (aligned) problem size.
    # bf16 sublane packing wants multiples of 16 on the second-minor dim.
    tm_e = min(tm, _round_up(m, 16))
    tn_e = min(tn, _round_up(vocab, 128))
    tk_e = min(tk, _round_up(emb, 128))

    m_pad = _round_up(m, tm_e)
    v_pad = _round_up(vocab, tn_e)
    e_pad = _round_up(emb, tk_e)

    x2d = x.reshape(m, emb).astype(cdt)
    w_c = w.astype(cdt)
    b2d = b.astype(jnp.float32).reshape(1, vocab)

    if (m_pad, e_pad) != (m, emb):
        x2d = jnp.pad(x2d, ((0, m_pad - m), (0, e_pad - emb)))
    if (e_pad, v_pad) != (emb, vocab):
        w_c = jnp.pad(w_c, ((0, e_pad - emb), (0, v_pad - vocab)))
    if v_pad != vocab:
        b2d = jnp.pad(b2d, ((0, 0), (0, v_pad - vocab)))

    # vocab outer (parallel, shards W across TCs on v7x), M inner, K last.
    grid = (v_pad // tn_e, m_pad // tm_e, e_pad // tk_e)

    out = pl.pallas_call(
        _lm_head_kernel,
        out_shape=jax.ShapeDtypeStruct((m_pad, v_pad), out_dtype),
        grid_spec=pltpu.PrefetchScalarGridSpec(
            num_scalar_prefetch=0,
            grid=grid,
            in_specs=[
                # x tile: depends on (i, k) only
                pl.BlockSpec((tm_e, tk_e), lambda j, i, k: (i, k)),
                # w tile: depends on (k, j) only -> constant across inner M
                pl.BlockSpec((tk_e, tn_e), lambda j, i, k: (k, j)),
                # bias tile: depends on j only -> fetched once per vocab tile
                pl.BlockSpec((1, tn_e), lambda j, i, k: (0, j)),
            ],
            out_specs=pl.BlockSpec((tm_e, tn_e), lambda j, i, k: (i, j)),
            scratch_shapes=[pltpu.VMEM((tm_e, tn_e), jnp.float32)],
        ),
        compiler_params=pltpu.CompilerParams(
            dimension_semantics=("parallel", "parallel", "arbitrary"),
            vmem_limit_bytes=48 * 1024 * 1024,
        ),
    )(x2d, w_c, b2d)

    out = out[:m, :vocab]
    return out.reshape(batch, seq, vocab)


def init_lm_head_params(key, embedding_dimension, number_of_tokens,
                        dtype=jnp.float32):
    """Deterministic init mirroring torch.nn.Linear (uniform +/- 1/sqrt(fan_in))."""
    kw, kb = jax.random.split(key)
    bound = 1.0 / jnp.sqrt(jnp.asarray(embedding_dimension, dtype=jnp.float32))
    # stored transposed: (E, V) so kernel does x @ w directly
    w = jax.random.uniform(
        kw, (embedding_dimension, number_of_tokens), dtype=dtype,
        minval=-bound, maxval=bound)
    b = jax.random.uniform(
        kb, (number_of_tokens,), dtype=dtype, minval=-bound, maxval=bound)
    return w, b


if __name__ == "__main__":
    key = jax.random.PRNGKey(0)
    kx, kp = jax.random.split(key)

    batch, seq, embedding_dimension, number_of_tokens = 2, 8, 32, 256

    x = jax.random.normal(
        kx, (batch, seq, embedding_dimension), dtype=jnp.float32)
    w, b = init_lm_head_params(kp, embedding_dimension, number_of_tokens)

    out = lm_head_pallas(x, w, b)
    out = jax.block_until_ready(out)

    # Reference: same bf16-cast x/w inputs, f32 accumulation, f32 bias add.
    xb = x.astype(jnp.bfloat16).astype(jnp.float32)
    wb = w.astype(jnp.bfloat16).astype(jnp.float32)
    ref = jnp.einsum(
        "bse,ev->bsv", xb, wb, precision=jax.lax.Precision.HIGHEST) + b

    assert out.shape == (batch, seq, number_of_tokens)
    assert jnp.allclose(out, ref, atol=1e-3, rtol=1e-3), float(
        jnp.max(jnp.abs(out - ref)))

    print("KERNEL_OK")
</pallas_src>

<mosaic_0001>
module attributes {stable_mosaic.version = 11 : i64} {
  func.func @_lm_head_kernel(%arg0: i32, %arg1: i32, %arg2: i32, %arg3: memref<16x128xbf16, #tpu.memory_space<vmem>>, %arg4: memref<128x256xbf16, #tpu.memory_space<vmem>>, %arg5: memref<1x256xf32, #tpu.memory_space<vmem>>, %arg6: memref<16x256xf32, #tpu.memory_space<vmem>>, %arg7: memref<16x256xf32, #tpu.memory_space<vmem>>) attributes {dimension_semantics = [#tpu.dimension_semantics<parallel>, #tpu.dimension_semantics<parallel>, #tpu.dimension_semantics<arbitrary>], iteration_bounds = array<i64: 1, 1, 1>, scalar_prefetch = 0 : i64, scratch_operands = 1 : i64, tpu.core_type = #tpu.core_type<tc>, window_params = [{transform_indices = @transform_0, window_bounds = array<i64: 16, 128>}, {transform_indices = @transform_1, window_bounds = array<i64: 128, 256>}, {transform_indices = @transform_2, window_bounds = array<i64: 1, 256>}, {transform_indices = @transform_3, window_bounds = array<i64: 16, 256>}]} {
    %c0_i32 = arith.constant 0 : i32
    %0 = arith.cmpi eq, %arg2, %c0_i32 : i32
    %1 = arith.extui %0 : i1 to i32
    %c0_i32_0 = arith.constant 0 : i32
    %2 = arith.cmpi ne, %1, %c0_i32_0 : i32
    scf.if %2 {
      %cst_10 = arith.constant 0.000000e+00 : f32
      %12 = vector.broadcast %cst_10 : f32 to vector<16x256xf32>
      %c0_11 = arith.constant 0 : index
      %c0_12 = arith.constant 0 : index
      %13 = vector.load %arg7[%c0_11, %c0_12] : memref<16x256xf32, #tpu.memory_space<vmem>>, vector<16x256xf32>
      tpu.vector_store %arg7[%c0_11, %c0_12], %12 {strides = array<i32>} : memref<16x256xf32, #tpu.memory_space<vmem>>, vector<16x256xf32>,
    } else {
    }
    %c0 = arith.constant 0 : index
    %c0_1 = arith.constant 0 : index
    %3 = vector.load %arg7[%c0, %c0_1] : memref<16x256xf32, #tpu.memory_space<vmem>>, vector<16x256xf32>
    %c0_2 = arith.constant 0 : index
    %c0_3 = arith.constant 0 : index
    %4 = vector.load %arg3[%c0_2, %c0_3] : memref<16x128xbf16, #tpu.memory_space<vmem>>, vector<16x128xbf16>
    %c0_4 = arith.constant 0 : index
    %c0_5 = arith.constant 0 : index
    %5 = vector.load %arg4[%c0_4, %c0_5] : memref<128x256xbf16, #tpu.memory_space<vmem>>, vector<128x256xbf16>
    %cst = arith.constant dense<0.000000e+00> : vector<16x256xf32>
    %6 = tpu.matmul %4, %5, %cst {dimension_numbers = #tpu.dot_dimension_numbers<[1], [0], [0], [1], [0, 0, 1, 1], [], []>} : vector<16x128xbf16>, vector<128x256xbf16>, vector<16x256xf32> -> vector<16x256xf32>
    %7 = arith.addf %3, %6 : vector<16x256xf32>
    %c0_6 = arith.constant 0 : index
    %c0_7 = arith.constant 0 : index
    %8 = vector.load %arg7[%c0_6, %c0_7] : memref<16x256xf32, #tpu.memory_space<vmem>>, vector<16x256xf32>
    tpu.vector_store %arg7[%c0_6, %c0_7], %7 {strides = array<i32>} : memref<16x256xf32, #tpu.memory_space<vmem>>, vector<16x256xf32>,
    %c0_i32_8 = arith.constant 0 : i32
    %9 = arith.cmpi eq, %arg2, %c0_i32_8 : i32
    %10 = arith.extui %9 : i1 to i32
    %c0_i32_9 = arith.constant 0 : i32
    %11 = arith.cmpi ne, %10, %c0_i32_9 : i32
    scf.if %11 {
      %c0_10 = arith.constant 0 : index
      %c0_11 = arith.constant 0 : index
      %12 = vector.load %arg7[%c0_10, %c0_11] : memref<16x256xf32, #tpu.memory_space<vmem>>, vector<16x256xf32>
      %c0_12 = arith.constant 0 : index
      %c0_13 = arith.constant 0 : index
      %13 = vector.load %arg5[%c0_12, %c0_13] : memref<1x256xf32, #tpu.memory_space<vmem>>, vector<1x256xf32>
      %14 = vector.broadcast %13 : vector<1x256xf32> to vector<16x256xf32>
      %15 = arith.addf %12, %14 : vector<16x256xf32>
      %c0_14 = arith.constant 0 : index
      %c0_15 = arith.constant 0 : index
      %16 = vector.load %arg6[%c0_14, %c0_15] : memref<16x256xf32, #tpu.memory_space<vmem>>, vector<16x256xf32>
      tpu.vector_store %arg6[%c0_14, %c0_15], %15 {strides = array<i32>} : memref<16x256xf32, #tpu.memory_space<vmem>>, vector<16x256xf32>,
    } else {
    }
    return
  }
  func.func @transform_0(%arg0: i32, %arg1: i32, %arg2: i32) -> (i32, i32) {
    %c0_i32 = arith.constant 0 : i32
    return %arg1, %arg2 : i32, i32
  }
  func.func @transform_1(%arg0: i32, %arg1: i32, %arg2: i32) -> (i32, i32) {
    %c0_i32 = arith.constant 0 : i32
    return %arg2, %arg0 : i32, i32
  }
  func.func @transform_2(%arg0: i32, %arg1: i32, %arg2: i32) -> (i32, i32) {
    %c0_i32 = arith.constant 0 : i32
    %c0_i32_0 = arith.constant 0 : i32
    return %c0_i32, %arg0 : i32, i32
  }
  func.func @transform_3(%arg0: i32, %arg1: i32, %arg2: i32) -> (i32, i32) {
    %c0_i32 = arith.constant 0 : i32
    return %arg1, %arg0 : i32, i32
  }
}

</mosaic_0001>

<llo_original>
// kernel: lm_head_pallas.1
$region0: #{lm_head_pallas.1}
  #allocation0 [shape = 'u32[]', space=smem, size = 0x4, offset = 0x4, fixed_abs, tag = 'smem constant byte address 0x4 - core index']
  #allocation1 [shape = 'u32[72,128]{1,0:T(1,128)}', space=vmem, size = 0x9000, scoped, tag = 'internal scratch']
  #allocation2 [shape = 'f32[16,256]{1,0:T(8,128)}', space=vmem, size = 0x4000, scoped, tag = 'scratch operand']
  %s0 = inlined_call_operand.vmem [shape: bf16[16,128], index: 0, kind: input, shape index: {}]
  %s1 = inlined_call_operand.vmem [shape: bf16[128,256], index: 1, kind: input, shape index: {}]
  %s2 = inlined_call_operand.vmem [shape: f32[1,256], index: 2, kind: input, shape index: {}]
  %s3 = inlined_call_operand.hbm [shape: f32[16,256], index: 3, kind: output, shape index: {}]
  %s4 = sld [smem:[#allocation0]]
  $region30: #{lm_head_pallas.1} parent=0
    _
  %s6 = ssub.s32 1, %s4
  %s7 = scalar_select 0, %s6, %s4
  $region1: #{lm_head_pallas.1} parent=0
    #allocation3 [shape = 'u8[16384]{0}', space=vmem, size = 0x4000, scoped, tag = 'output window, operand 0, single buffered']
    #allocation4 [shape = 's32[1]{0}', space=sflag, size = 0x4, scoped, tag = 'scoped memory for lm_head_pallas.1']
    %8 = vsyncpa [#allocation4], 0
    // Predicated region
    $region2: #{lm_head_pallas.1} parent=1 // pred_check
      _
    $region3: #{lm_head_pallas.1} parent=1 // pred_check_branch
      %10 = sbr.rel (0) target = $region5
    $region4: #{lm_head_pallas.1} parent=1 // pred_region
      _
    $region5: #{lm_head_pallas.1} parent=1 // pred_fallthru
      _
    // Predicated region
    $region6: #{lm_head_pallas.1} parent=1 // pred_check
      _
    $region7: #{lm_head_pallas.1} parent=1 // pred_check_branch
      %12 = sbr.rel (0) target = $region9
    $region8: #{lm_head_pallas.1} parent=1 // pred_region
      _
    $region9: #{lm_head_pallas.1} parent=1 // pred_fallthru
      _
    // Predicated region
    $region10: #{lm_head_pallas.1} parent=1 // pred_check
      _
    $region11: #{lm_head_pallas.1} parent=1 // pred_check_branch
      %14 = sbr.rel (0) target = $region13
    $region12: #{lm_head_pallas.1} parent=1 // pred_region
      _
    $region13: #{lm_head_pallas.1} parent=1 // pred_fallthru
      _
    %p15 = scmp.eq.s32.totalorder 0, 0
    // Predicated region
    $region14: #{lm_head_pallas.1} parent=1 // pred_check
      %p16 = pneg %p15
    $region15: #{lm_head_pallas.1} parent=1 // pred_check_branch
      %18 = sbr.rel (%p16) target = $region17
    $region16: #{lm_head_pallas.1} parent=1 // pred_region
      %19 = vst [vmem:[#allocation2] sm:$0xff] 0.0
      %20 = vst [vmem:[#allocation2 + $0x8] sm:$0xff] 0.0
      %21 = vst [vmem:[#allocation2 + $0x10] sm:$0xff] 0.0
      %22 = vst [vmem:[#allocation2 + $0x18] sm:$0xff] 0.0
    $region17: #{lm_head_pallas.1} parent=1 // pred_fallthru
      _
    %v23 = vld [vmem:[#allocation2] sm:$0xff]
    %v24 = vld [vmem:[#allocation2 + $0x8] sm:$0xff]
    %v25 = vld [vmem:[#allocation2 + $0x10] sm:$0xff]
    %v26 = vld [vmem:[#allocation2 + $0x18] sm:$0xff]
    %v27 = vld [vmem:[%s0] sm:$0xf]
    %v28 = vld [vmem:[%s0 + $0x4] sm:$0xf]
    %v29 = vld [vmem:[%s1] sm:$0xff]
    %v30 = vld [vmem:[%s1 + $0x8] sm:$0xff]
    %v31 = vld [vmem:[%s1 + $0x10] sm:$0xff]
    %v32 = vld [vmem:[%s1 + $0x18] sm:$0xff]
    %v33 = vld [vmem:[%s1 + $0x20] sm:$0xff]
    %v34 = vld [vmem:[%s1 + $0x28] sm:$0xff]
    %v35 = vld [vmem:[%s1 + $0x30] sm:$0xff]
    %v36 = vld [vmem:[%s1 + $0x38] sm:$0xff]
    %v37 = vld [vmem:[%s1 + $0x40] sm:$0xff]
    %v38 = vld [vmem:[%s1 + $0x48] sm:$0xff]
    %v39 = vld [vmem:[%s1 + $0x50] sm:$0xff]
    %v40 = vld [vmem:[%s1 + $0x58] sm:$0xff]
    %v41 = vld [vmem:[%s1 + $0x60] sm:$0xff]
    %v42 = vld [vmem:[%s1 + $0x68] sm:$0xff]
    %v43 = vld [vmem:[%s1 + $0x70] sm:$0xff]
    %v44 = vld [vmem:[%s1 + $0x78] sm:$0xff]
    %v47 = vunpack.c.l.b16 %v27
    %v48 = vunpack.c.l.b16 %v28
    %v49 = vpack.c.b16 %v48, %v47
    %v67 = vunpack.c.l.b16 %v29
    %v68 = vunpack.c.h.b16 %v29
    %v69 = vunpack.c.l.b16 %v30
    %v70 = vunpack.c.h.b16 %v30
    %v71 = vunpack.c.l.b16 %v31
    %v72 = vunpack.c.h.b16 %v31
    %v73 = vunpack.c.l.b16 %v32
    %v74 = vunpack.c.h.b16 %v32
    %v75 = vunpack.c.l.b16 %v33
    %v76 = vunpack.c.h.b16 %v33
    %v77 = vunpack.c.l.b16 %v34
    %v78 = vunpack.c.h.b16 %v34
    %v79 = vunpack.c.l.b16 %v35
    %v80 = vunpack.c.h.b16 %v35
    %v81 = vunpack.c.l.b16 %v36
    %v82 = vunpack.c.h.b16 %v36
    %v83 = vunpack.c.l.b16 %v37
    %v84 = vunpack.c.h.b16 %v37
    %v85 = vunpack.c.l.b16 %v38
    %v86 = vunpack.c.h.b16 %v38
    %v87 = vunpack.c.l.b16 %v39
    %v88 = vunpack.c.h.b16 %v39
    %v89 = vunpack.c.l.b16 %v40
    %v90 = vunpack.c.h.b16 %v40
    %v91 = vunpack.c.l.b16 %v41
    %v92 = vunpack.c.h.b16 %v41
    %v93 = vunpack.c.l.b16 %v42
    %v94 = vunpack.c.h.b16 %v42
    %v95 = vunpack.c.l.b16 %v43
    %v96 = vunpack.c.h.b16 %v43
    %v97 = vunpack.c.l.b16 %v44
    %v98 = vunpack.c.h.b16 %v44
    %v99 = vpack.c.b16 %v69, %v67
    %v100 = vpack.c.b16 %v70, %v68
    %v101 = vpack.c.b16 %v73, %v71
    %v102 = vpack.c.b16 %v74, %v72
    %v103 = vpack.c.b16 %v77, %v75
    %v104 = vpack.c.b16 %v78, %v76
    %v105 = vpack.c.b16 %v81, %v79
    %v106 = vpack.c.b16 %v82, %v80
    %v107 = vpack.c.b16 %v85, %v83
    %v108 = vpack.c.b16 %v86, %v84
    %v109 = vpack.c.b16 %v89, %v87
    %v110 = vpack.c.b16 %v90, %v88
    %v111 = vpack.c.b16 %v93, %v91
    %v112 = vpack.c.b16 %v94, %v92
    %v113 = vpack.c.b16 %v97, %v95
    %v114 = vpack.c.b16 %v98, %v96
    %131 = vmatpush.bf16.msra.mxu0 %v113
    %132 = vmatpush.bf16.msra.mxu0 %v111
    %133 = vmatpush.bf16.msra.mxu0 %v109
    %134 = vmatpush.bf16.msra.mxu0 %v107
    %135 = vmatpush.bf16.msra.mxu0 %v105
    %136 = vmatpush.bf16.msra.mxu0 %v103
    %137 = vmatpush.bf16.msra.mxu0 %v101
    %138 = vmatpush.bf16.msra.mxu0 %v99
    %139 = vmatmul.bf16.gmra.mxu0 %v49
    %v140 = vpop.f32.mrf.mxu0
    %v141 = vadd.f32 0.0, %v140
    %v142 = vpop.f32.mrf.mxu0
    %v143 = vadd.f32 0.0, %v142
    %144 = vdwg.mxu0
    %145 = vmatpush.bf16.msra.mxu0 %v114
    %146 = vmatpush.bf16.msra.mxu0 %v112
    %147 = vmatpush.bf16.msra.mxu0 %v110
    %148 = vmatpush.bf16.msra.mxu0 %v108
    %149 = vmatpush.bf16.msra.mxu0 %v106
    %150 = vmatpush.bf16.msra.mxu0 %v104
    %151 = vmatpush.bf16.msra.mxu0 %v102
    %152 = vmatpush.bf16.msra.mxu0 %v100
    %153 = vmatmul.bf16.gmra.mxu0 %v49
    %v154 = vpop.f32.mrf.mxu0
    %v155 = vadd.f32 0.0, %v154
    %v156 = vpop.f32.mrf.mxu0
    %v157 = vadd.f32 0.0, %v156
    %158 = vdwg.mxu0
    %v159 = vadd.f32 %v23, %v141
    %v160 = vadd.f32 %v24, %v155
    %v161 = vadd.f32 %v25, %v143
    %v162 = vadd.f32 %v26, %v157
    %163 = vst [vmem:[#allocation2] sm:$0xff] %v159
    %164 = vst [vmem:[#allocation2 + $0x8] sm:$0xff] %v160
    %165 = vst [vmem:[#allocation2 + $0x10] sm:$0xff] %v161
    %166 = vst [vmem:[#allocation2 + $0x18] sm:$0xff] %v162
    // Predicated region
    $region18: #{lm_head_pallas.1} parent=1 // pred_check
      %p167 = pneg %p15
    $region19: #{lm_head_pallas.1} parent=1 // pred_check_branch
      %169 = sbr.rel (%p167) target = $region21
    $region20: #{lm_head_pallas.1} parent=1 // pred_region
      %v170 = vld [vmem:[#allocation2] sm:$0xff]
      %v171 = vld [vmem:[#allocation2 + $0x8] sm:$0xff]
      %v172 = vld [vmem:[#allocation2 + $0x10] sm:$0xff]
      %v173 = vld [vmem:[#allocation2 + $0x18] sm:$0xff]
      %v174 = vld [vmem:[%s2] sm:$0x3]
      %v176 = vperm.slane %v174, 0
      %v177 = vperm.slane %v174, 1
      %v180 = vadd.f32 %v170, %v176
      %v181 = vadd.f32 %v171, %v177
      %v182 = vadd.f32 %v172, %v176
      %v183 = vadd.f32 %v173, %v177
      %184 = vst [vmem:[#allocation3] sm:$0xff] %v180
      %185 = vst [vmem:[#allocation3 + $0x8] sm:$0xff] %v181
      %186 = vst [vmem:[#allocation3 + $0x10] sm:$0xff] %v182
      %187 = vst [vmem:[#allocation3 + $0x18] sm:$0xff] %v183
    $region21: #{lm_head_pallas.1} parent=1 // pred_fallthru
      _
    // Predicated region
    $region22: #{lm_head_pallas.1} parent=1 // pred_check
      _
    $region23: #{lm_head_pallas.1} parent=1 // pred_check_branch
      %189 = sbr.rel (0) target = $region25
    $region24: #{lm_head_pallas.1} parent=1 // pred_region
      %191 = vsyncadd [#allocation4], 0
      %s192 = sshll.u32 [#allocation3], 4
      %s193 = int_to_ptr.vmem [resolvable:$true] %s192
      %s194 = sshll.u32 %s3, 4
      %s195 = int_to_ptr.hbm [resolvable:$true] %s194
      %200 = dma.vmem_to_hbm [thread:$0]  %s193, 512, %s195, [#allocation4], 256, 256, 16
    $region25: #{lm_head_pallas.1} parent=1 // pred_fallthru
      _
    // Predicated region
    $region26: #{lm_head_pallas.1} parent=1 // pred_check
      _
    $region27: #{lm_head_pallas.1} parent=1 // pred_check_branch
      %202 = sbr.rel (0) target = $region29
    $region28: #{lm_head_pallas.1} parent=1 // pred_region
      %204 = dma.done [#allocation4], 512
    $region29: #{lm_head_pallas.1} parent=1 // pred_fallthru
      _
    %205 = vsyncpa [#allocation4], 1

</llo_original>
